<compile_context>
chip_gen: v5e
topology: v5e:2x2
jax: 0.10.0
libtpu: 0.0.40
codegen_flags: <defaults>
</compile_context>

<pallas_src>
import functools

import jax
import jax.numpy as jnp
from jax.experimental import pallas as pl
from jax.experimental.pallas import tpu as pltpu


def _mlp_kernel(x_ref, w1_ref, b1_ref, w2_ref, b2_ref, w3_ref, b3_ref, o_ref,
                *, compute_dtype):
    """Fused 3-layer MLP, sample-major (samples on sublanes).

    x_ref : (tile_n, F)   row tile of X (Nsamples, Nfeatures)
    wK    : (in, out)     pre-transposed in the wrapper -> native MXU A @ B
    bK    : (1, out)      f32, broadcasts over the sample (sublane) axis
    o_ref : (tile_n, O)   row tile of the (Nsamples, Ntargets) output
    """
    x = x_ref[...].astype(compute_dtype)

    # Layer 1 + ReLU: (tile_n, F) @ (F, H1) -> (tile_n, H1), f32 accumulate.
    h = jnp.dot(x, w1_ref[...], preferred_element_type=jnp.float32)
    h = jnp.maximum(h + b1_ref[...], 0.0)

    # Layer 2 + ReLU.
    h = jnp.dot(h.astype(compute_dtype), w2_ref[...],
                preferred_element_type=jnp.float32)
    h = jnp.maximum(h + b2_ref[...], 0.0)

    # Layer 3 (no activation).
    y = jnp.dot(h.astype(compute_dtype), w3_ref[...],
                preferred_element_type=jnp.float32)
    o_ref[...] = (y + b3_ref[...]).astype(o_ref.dtype)


def nn_emulator_forward(x, params, *, tile_n=4096, compute_dtype=jnp.bfloat16,
                        core_parallel=False):
    """Fused MLP forward (mirrors NNEmulator.forward).

    x       : (N, F) float32
    params  : dict with w1 (H1,F), b1 (H1,), w2 (H2,H1), b2 (H2,),
              w3 (O,H2), b3 (O,)   (PyTorch Linear convention)
    tile_n  : samples per grid step (multiple of 128; sweep 2048-8192 for
              large N -- the kernel is HBM/overhead bound, not compute bound).
    core_parallel : v7x-only knob; shard the grid axis across both TensorCores.
    Returns (N, O) float32, same layout as the torch module.
    """
    w1, b1 = params["w1"], params["b1"]
    w2, b2 = params["w2"], params["b2"]
    w3, b3 = params["w3"], params["b3"]

    n, f = x.shape
    h1 = w1.shape[0]
    h2 = w2.shape[0]
    out_dim = w3.shape[0]

    # Sample tile: multiple of 128, no larger than needed; never shrunk just to
    # force a multi-step grid (per-step DMA stays bandwidth-class).
    tile_cap = pl.cdiv(n, 128) * 128
    tile_n = max(128, (min(int(tile_n), tile_cap) // 128) * 128)
    grid = (pl.cdiv(n, tile_n),)

    # Pre-transpose weights once (tiny, one-time) to (in, out) so every layer
    # is a plain MXU matmul with no in-kernel transposes; cast to MXU dtype.
    # Biases stay f32 and add onto the f32 accumulator.
    w1t = w1.T.astype(compute_dtype)
    w2t = w2.T.astype(compute_dtype)
    w3t = w3.T.astype(compute_dtype)
    b1r = b1.reshape(1, h1).astype(jnp.float32)
    b2r = b2.reshape(1, h2).astype(jnp.float32)
    b3r = b3.reshape(1, out_dim).astype(jnp.float32)

    # Constant index maps -> weights/biases stay resident in VMEM across steps.
    resident = lambda shape: pl.BlockSpec(shape, lambda i: (0, 0))

    flops = 2 * n * (f * h1 + h1 * h2 + h2 * out_dim)
    bytes_accessed = int(
        n * f * x.dtype.itemsize            # read X
        + n * out_dim * x.dtype.itemsize    # write Y (no extra transpose pass)
        + sum(int(a.size) * a.dtype.itemsize
              for a in (w1t, b1r, w2t, b2r, w3t, b3r)))

    semantics = (pltpu.CORE_PARALLEL if core_parallel else "parallel",)

    return pl.pallas_call(
        functools.partial(_mlp_kernel, compute_dtype=compute_dtype),
        out_shape=jax.ShapeDtypeStruct((n, out_dim), x.dtype),
        grid_spec=pltpu.PrefetchScalarGridSpec(
            num_scalar_prefetch=0,
            grid=grid,
            in_specs=[
                pl.BlockSpec((tile_n, f), lambda i: (i, 0)),   # X row tile
                resident((f, h1)),        # w1^T
                resident((1, h1)),        # b1
                resident((h1, h2)),       # w2^T
                resident((1, h2)),        # b2
                resident((h2, out_dim)),  # w3^T
                resident((1, out_dim)),   # b3
            ],
            out_specs=pl.BlockSpec((tile_n, out_dim), lambda i: (i, 0)),
        ),
        compiler_params=pltpu.CompilerParams(
            dimension_semantics=semantics,
            vmem_limit_bytes=48 * 1024 * 1024,
        ),
        cost_estimate=pl.CostEstimate(
            flops=flops, transcendentals=0, bytes_accessed=bytes_accessed),
    )(x, w1t, b1r, w2t, b2r, w3t, b3r)


def _reference_forward(x, params):
    """Plain-JAX reference mirroring NNEmulator.forward (high-precision dots)."""
    dot = functools.partial(jnp.dot, precision=jax.lax.Precision.HIGHEST)
    h = dot(x, params["w1"].T) + params["b1"]
    h = jnp.maximum(h, 0.0)
    h = dot(h, params["w2"].T) + params["b2"]
    h = jnp.maximum(h, 0.0)
    return dot(h, params["w3"].T) + params["b3"]


def _init_params(key, f, h1, h2, out_dim):
    """Deterministic synthetic parameter init (mimics set_layers/set_inits)."""
    k1, k2, k3, k4, k5, k6 = jax.random.split(key, 6)
    scale = lambda fan_in: 1.0 / jnp.sqrt(jnp.float32(fan_in))
    return {
        "w1": jax.random.normal(k1, (h1, f), jnp.float32) * scale(f),
        "b1": jax.random.normal(k2, (h1,), jnp.float32) * 0.1,
        "w2": jax.random.normal(k3, (h2, h1), jnp.float32) * scale(h1),
        "b2": jax.random.normal(k4, (h2,), jnp.float32) * 0.1,
        "w3": jax.random.normal(k5, (out_dim, h2), jnp.float32) * scale(h2),
        "b3": jax.random.normal(k6, (out_dim,), jnp.float32) * 0.1,
    }


if __name__ == "__main__":
    key = jax.random.PRNGKey(0)
    kx, kx2, kp = jax.random.split(key, 3)

    n_features, hidden1, hidden2, n_targets = 4, 32, 32, 3
    params = _init_params(kp, n_features, hidden1, hidden2, n_targets)

    n_samples = 256
    x = jax.random.normal(kx, (n_samples, n_features), jnp.float32)
    y_ref = _reference_forward(x, params)

    # Default config (tile clamps to 256, single grid step), bf16 MXU path.
    y = jax.block_until_ready(nn_emulator_forward(x, params))
    assert y.shape == (n_samples, n_targets)
    assert jnp.allclose(y, y_ref, atol=5e-2, rtol=5e-2), "bf16 path mismatch"

    # Multi-step grid (tile_n=128 -> grid of 2) with f32 compute: tight check.
    y32 = jax.block_until_ready(
        nn_emulator_forward(x, params, tile_n=128, compute_dtype=jnp.float32))
    assert jnp.allclose(y32, y_ref, atol=1e-4, rtol=1e-4), "f32 path mismatch"

    # Ragged sample count: partial last block handled by Pallas masking; the
    # contraction is over features, so garbage padding rows stay row-local.
    n_ragged = 200
    x2 = jax.random.normal(kx2, (n_ragged, n_features), jnp.float32)
    y2 = jax.block_until_ready(nn_emulator_forward(x2, params, tile_n=128))
    y2_ref = _reference_forward(x2, params)
    assert y2.shape == (n_ragged, n_targets)
    assert jnp.allclose(y2, y2_ref, atol=5e-2, rtol=5e-2), "ragged-N mismatch"

    print("KERNEL_OK")
</pallas_src>

<mosaic_0001>
module attributes {stable_mosaic.version = 11 : i64} {
  func.func @_mlp_kernel(%arg0: i32, %arg1: memref<256x4xf32, #tpu.memory_space<vmem>>, %arg2: memref<4x32xbf16, #tpu.memory_space<vmem>>, %arg3: memref<1x32xf32, #tpu.memory_space<vmem>>, %arg4: memref<32x32xbf16, #tpu.memory_space<vmem>>, %arg5: memref<1x32xf32, #tpu.memory_space<vmem>>, %arg6: memref<32x3xbf16, #tpu.memory_space<vmem>>, %arg7: memref<1x3xf32, #tpu.memory_space<vmem>>, %arg8: memref<256x3xf32, #tpu.memory_space<vmem>>) attributes {dimension_semantics = [#tpu.dimension_semantics<parallel>], iteration_bounds = array<i64: 1>, scalar_prefetch = 0 : i64, scratch_operands = 0 : i64, tpu.core_type = #tpu.core_type<tc>, window_params = [{transform_indices = @transform_0, window_bounds = array<i64: 256, 4>}, {pipeline_mode = #tpu.pipeline_mode<synchronous>, transform_indices = @transform_1, window_bounds = array<i64: 4, 32>}, {pipeline_mode = #tpu.pipeline_mode<synchronous>, transform_indices = @transform_2, window_bounds = array<i64: 1, 32>}, {pipeline_mode = #tpu.pipeline_mode<synchronous>, transform_indices = @transform_3, window_bounds = array<i64: 32, 32>}, {pipeline_mode = #tpu.pipeline_mode<synchronous>, transform_indices = @transform_4, window_bounds = array<i64: 1, 32>}, {pipeline_mode = #tpu.pipeline_mode<synchronous>, transform_indices = @transform_5, window_bounds = array<i64: 32, 3>}, {pipeline_mode = #tpu.pipeline_mode<synchronous>, transform_indices = @transform_6, window_bounds = array<i64: 1, 3>}, {transform_indices = @transform_7, window_bounds = array<i64: 256, 3>}]} {
    %c0 = arith.constant 0 : index
    %c0_0 = arith.constant 0 : index
    %0 = vector.load %arg1[%c0, %c0_0] : memref<256x4xf32, #tpu.memory_space<vmem>>, vector<256x4xf32>
    %1 = arith.truncf %0 : vector<256x4xf32> to vector<256x4xbf16>
    %c0_1 = arith.constant 0 : index
    %c0_2 = arith.constant 0 : index
    %2 = vector.load %arg2[%c0_1, %c0_2] : memref<4x32xbf16, #tpu.memory_space<vmem>>, vector<4x32xbf16>
    %cst = arith.constant dense<0.000000e+00> : vector<256x32xf32>
    %3 = tpu.matmul %1, %2, %cst {dimension_numbers = #tpu.dot_dimension_numbers<[1], [0], [0], [1], [0, 0, 1, 1], [], []>} : vector<256x4xbf16>, vector<4x32xbf16>, vector<256x32xf32> -> vector<256x32xf32>
    %c0_3 = arith.constant 0 : index
    %c0_4 = arith.constant 0 : index
    %4 = vector.load %arg3[%c0_3, %c0_4] : memref<1x32xf32, #tpu.memory_space<vmem>>, vector<1x32xf32>
    %5 = vector.broadcast %4 : vector<1x32xf32> to vector<256x32xf32>
    %6 = arith.addf %3, %5 : vector<256x32xf32>
    %cst_5 = arith.constant 0.000000e+00 : f32
    %7 = vector.broadcast %cst_5 : f32 to vector<256x32xf32>
    %8 = arith.maximumf %6, %7 : vector<256x32xf32>
    %9 = arith.truncf %8 : vector<256x32xf32> to vector<256x32xbf16>
    %c0_6 = arith.constant 0 : index
    %c0_7 = arith.constant 0 : index
    %10 = vector.load %arg4[%c0_6, %c0_7] : memref<32x32xbf16, #tpu.memory_space<vmem>>, vector<32x32xbf16>
    %cst_8 = arith.constant dense<0.000000e+00> : vector<256x32xf32>
    %11 = tpu.matmul %9, %10, %cst_8 {dimension_numbers = #tpu.dot_dimension_numbers<[1], [0], [0], [1], [0, 0, 1, 1], [], []>} : vector<256x32xbf16>, vector<32x32xbf16>, vector<256x32xf32> -> vector<256x32xf32>
    %c0_9 = arith.constant 0 : index
    %c0_10 = arith.constant 0 : index
    %12 = vector.load %arg5[%c0_9, %c0_10] : memref<1x32xf32, #tpu.memory_space<vmem>>, vector<1x32xf32>
    %13 = vector.broadcast %12 : vector<1x32xf32> to vector<256x32xf32>
    %14 = arith.addf %11, %13 : vector<256x32xf32>
    %cst_11 = arith.constant 0.000000e+00 : f32
    %15 = vector.broadcast %cst_11 : f32 to vector<256x32xf32>
    %16 = arith.maximumf %14, %15 : vector<256x32xf32>
    %17 = arith.truncf %16 : vector<256x32xf32> to vector<256x32xbf16>
    %c0_12 = arith.constant 0 : index
    %c0_13 = arith.constant 0 : index
    %18 = vector.load %arg6[%c0_12, %c0_13] : memref<32x3xbf16, #tpu.memory_space<vmem>>, vector<32x3xbf16>
    %cst_14 = arith.constant dense<0.000000e+00> : vector<256x3xf32>
    %19 = tpu.matmul %17, %18, %cst_14 {dimension_numbers = #tpu.dot_dimension_numbers<[1], [0], [0], [1], [0, 0, 1, 1], [], []>} : vector<256x32xbf16>, vector<32x3xbf16>, vector<256x3xf32> -> vector<256x3xf32>
    %c0_15 = arith.constant 0 : index
    %c0_16 = arith.constant 0 : index
    %20 = vector.load %arg7[%c0_15, %c0_16] : memref<1x3xf32, #tpu.memory_space<vmem>>, vector<1x3xf32>
    %21 = vector.broadcast %20 : vector<1x3xf32> to vector<256x3xf32>
    %22 = arith.addf %19, %21 : vector<256x3xf32>
    %c0_17 = arith.constant 0 : index
    %c0_18 = arith.constant 0 : index
    %23 = vector.load %arg8[%c0_17, %c0_18] : memref<256x3xf32, #tpu.memory_space<vmem>>, vector<256x3xf32>
    tpu.vector_store %arg8[%c0_17, %c0_18], %22 {strides = array<i32>} : memref<256x3xf32, #tpu.memory_space<vmem>>, vector<256x3xf32>,
    return
  }
  func.func @transform_0(%arg0: i32) -> (i32, i32) {
    %c0_i32 = arith.constant 0 : i32
    %c0_i32_0 = arith.constant 0 : i32
    return %arg0, %c0_i32 : i32, i32
  }
  func.func @transform_1(%arg0: i32) -> (i32, i32) {
    %c0_i32 = arith.constant 0 : i32
    %c0_i32_0 = arith.constant 0 : i32
    %c0_i32_1 = arith.constant 0 : i32
    return %c0_i32, %c0_i32_0 : i32, i32
  }
  func.func @transform_2(%arg0: i32) -> (i32, i32) {
    %c0_i32 = arith.constant 0 : i32
    %c0_i32_0 = arith.constant 0 : i32
    %c0_i32_1 = arith.constant 0 : i32
    return %c0_i32, %c0_i32_0 : i32, i32
  }
  func.func @transform_3(%arg0: i32) -> (i32, i32) {
    %c0_i32 = arith.constant 0 : i32
    %c0_i32_0 = arith.constant 0 : i32
    %c0_i32_1 = arith.constant 0 : i32
    return %c0_i32, %c0_i32_0 : i32, i32
  }
  func.func @transform_4(%arg0: i32) -> (i32, i32) {
    %c0_i32 = arith.constant 0 : i32
    %c0_i32_0 = arith.constant 0 : i32
    %c0_i32_1 = arith.constant 0 : i32
    return %c0_i32, %c0_i32_0 : i32, i32
  }
  func.func @transform_5(%arg0: i32) -> (i32, i32) {
    %c0_i32 = arith.constant 0 : i32
    %c0_i32_0 = arith.constant 0 : i32
    %c0_i32_1 = arith.constant 0 : i32
    return %c0_i32, %c0_i32_0 : i32, i32
  }
  func.func @transform_6(%arg0: i32) -> (i32, i32) {
    %c0_i32 = arith.constant 0 : i32
    %c0_i32_0 = arith.constant 0 : i32
    %c0_i32_1 = arith.constant 0 : i32
    return %c0_i32, %c0_i32_0 : i32, i32
  }
  func.func @transform_7(%arg0: i32) -> (i32, i32) {
    %c0_i32 = arith.constant 0 : i32
    %c0_i32_0 = arith.constant 0 : i32
    return %arg0, %c0_i32 : i32, i32
  }
}

</mosaic_0001>

<llo_original>
// kernel: tpu_custom_call.1
$region0: #{tpu_custom_call.1}
  #allocation0 [shape = 'u32[]', space=smem, size = 0x4, offset = 0x4, fixed_abs, tag = 'smem constant byte address 0x4 - core index']
  #allocation1 [shape = 'u32[72,128]{1,0:T(1,128)}', space=vmem, size = 0x9000, scoped, tag = 'internal scratch']
  %s0 = inlined_call_operand.vmem [shape: f32[256,4], index: 0, kind: input, shape index: {}]
  %s1 = inlined_call_operand.vmem [shape: bf16[4,32], index: 1, kind: input, shape index: {}]
  %s2 = inlined_call_operand.vmem [shape: f32[1,32], index: 2, kind: input, shape index: {}]
  %s3 = inlined_call_operand.vmem [shape: bf16[32,32], index: 3, kind: input, shape index: {}]
  %s4 = inlined_call_operand.vmem [shape: f32[1,32], index: 4, kind: input, shape index: {}]
  %s5 = inlined_call_operand.vmem [shape: bf16[32,3], index: 5, kind: input, shape index: {}]
  %s6 = inlined_call_operand.vmem [shape: f32[1,3], index: 6, kind: input, shape index: {}]
  %s7 = inlined_call_operand.vmem [shape: f32[256,3], index: 7, kind: output, shape index: {}]
  %s8 = sld [smem:[#allocation0]]
  $region38: #{tpu_custom_call.1} parent=0
    _
  %s10 = ssub.s32 1, %s8
  %s11 = scalar_select 0, %s10, %s8
  // Predicated region
  $region2: #{tpu_custom_call.1} parent=0 // pred_check
    _
  $region3: #{tpu_custom_call.1} parent=0 // pred_check_branch
    %13 = sbr.rel (0) target = $region5
  $region4: #{tpu_custom_call.1} parent=0 // pred_region
    _
  $region5: #{tpu_custom_call.1} parent=0 // pred_fallthru
    _
  // Predicated region
  $region6: #{tpu_custom_call.1} parent=0 // pred_check
    _
  $region7: #{tpu_custom_call.1} parent=0 // pred_check_branch
    %15 = sbr.rel (0) target = $region9
  $region8: #{tpu_custom_call.1} parent=0 // pred_region
    _
  $region9: #{tpu_custom_call.1} parent=0 // pred_fallthru
    _
  // Predicated region
  $region10: #{tpu_custom_call.1} parent=0 // pred_check
    _
  $region11: #{tpu_custom_call.1} parent=0 // pred_check_branch
    %17 = sbr.rel (0) target = $region13
  $region12: #{tpu_custom_call.1} parent=0 // pred_region
    _
  $region13: #{tpu_custom_call.1} parent=0 // pred_fallthru
    _
  // Predicated region
  $region14: #{tpu_custom_call.1} parent=0 // pred_check
    _
  $region15: #{tpu_custom_call.1} parent=0 // pred_check_branch
    %19 = sbr.rel (0) target = $region17
  $region16: #{tpu_custom_call.1} parent=0 // pred_region
    _
  $region17: #{tpu_custom_call.1} parent=0 // pred_fallthru
    _
  // Predicated region
  $region18: #{tpu_custom_call.1} parent=0 // pred_check
    _
  $region19: #{tpu_custom_call.1} parent=0 // pred_check_branch
    %21 = sbr.rel (0) target = $region21
  $region20: #{tpu_custom_call.1} parent=0 // pred_region
    _
  $region21: #{tpu_custom_call.1} parent=0 // pred_fallthru
    _
  // Predicated region
  $region22: #{tpu_custom_call.1} parent=0 // pred_check
    _
  $region23: #{tpu_custom_call.1} parent=0 // pred_check_branch
    %23 = sbr.rel (0) target = $region25
  $region24: #{tpu_custom_call.1} parent=0 // pred_region
    _
  $region25: #{tpu_custom_call.1} parent=0 // pred_fallthru
    _
  // Predicated region
  $region26: #{tpu_custom_call.1} parent=0 // pred_check
    _
  $region27: #{tpu_custom_call.1} parent=0 // pred_check_branch
    %25 = sbr.rel (0) target = $region29
  $region28: #{tpu_custom_call.1} parent=0 // pred_region
    _
  $region29: #{tpu_custom_call.1} parent=0 // pred_fallthru
    _
  %v27 = vld [vmem:[%s0] sm:$0xff]
  %v28 = vld [vmem:[%s0 + $0x8] sm:$0xff]
  %v29 = vld [vmem:[%s0 + $0x10] sm:$0xff]
  %v30 = vld [vmem:[%s0 + $0x18] sm:$0xff]
  %v31 = vld [vmem:[%s0 + $0x20] sm:$0xff]
  %v32 = vld [vmem:[%s0 + $0x28] sm:$0xff]
  %v33 = vld [vmem:[%s0 + $0x30] sm:$0xff]
  %v34 = vld [vmem:[%s0 + $0x38] sm:$0xff]
  %v35 = vld [vmem:[%s0 + $0x40] sm:$0xff]
  %v36 = vld [vmem:[%s0 + $0x48] sm:$0xff]
  %v37 = vld [vmem:[%s0 + $0x50] sm:$0xff]
  %v38 = vld [vmem:[%s0 + $0x58] sm:$0xff]
  %v39 = vld [vmem:[%s0 + $0x60] sm:$0xff]
  %v40 = vld [vmem:[%s0 + $0x68] sm:$0xff]
  %v41 = vld [vmem:[%s0 + $0x70] sm:$0xff]
  %v42 = vld [vmem:[%s0 + $0x78] sm:$0xff]
  %v43 = vld [vmem:[%s0 + $0x80] sm:$0xff]
  %v44 = vld [vmem:[%s0 + $0x88] sm:$0xff]
  %v45 = vld [vmem:[%s0 + $0x90] sm:$0xff]
  %v46 = vld [vmem:[%s0 + $0x98] sm:$0xff]
  %v47 = vld [vmem:[%s0 + $0xa0] sm:$0xff]
  %v48 = vld [vmem:[%s0 + $0xa8] sm:$0xff]
  %v49 = vld [vmem:[%s0 + $0xb0] sm:$0xff]
  %v50 = vld [vmem:[%s0 + $0xb8] sm:$0xff]
  %v51 = vld [vmem:[%s0 + $0xc0] sm:$0xff]
  %v52 = vld [vmem:[%s0 + $0xc8] sm:$0xff]
  %v53 = vld [vmem:[%s0 + $0xd0] sm:$0xff]
  %v54 = vld [vmem:[%s0 + $0xd8] sm:$0xff]
  %v55 = vld [vmem:[%s0 + $0xe0] sm:$0xff]
  %v56 = vld [vmem:[%s0 + $0xe8] sm:$0xff]
  %v57 = vld [vmem:[%s0 + $0xf0] sm:$0xff]
  %v58 = vld [vmem:[%s0 + $0xf8] sm:$0xff]
  %v59 = vpack.c.bf16 %v28, %v27
  %v60 = vpack.c.bf16 %v30, %v29
  %v61 = vpack.c.bf16 %v32, %v31
  %v62 = vpack.c.bf16 %v34, %v33
  %v63 = vpack.c.bf16 %v36, %v35
  %v64 = vpack.c.bf16 %v38, %v37
  %v65 = vpack.c.bf16 %v40, %v39
  %v66 = vpack.c.bf16 %v42, %v41
  %v67 = vpack.c.bf16 %v44, %v43
  %v68 = vpack.c.bf16 %v46, %v45
  %v69 = vpack.c.bf16 %v48, %v47
  %v70 = vpack.c.bf16 %v50, %v49
  %v71 = vpack.c.bf16 %v52, %v51
  %v72 = vpack.c.bf16 %v54, %v53
  %v73 = vpack.c.bf16 %v56, %v55
  %v74 = vpack.c.bf16 %v58, %v57
  %v75 = vld [vmem:[%s1] sm:$0x3]
  %v76 = vld [vmem:[%s2] sm:$0x1]
  %v78 = vperm.slane %v76, 0
  %vm80 = vcmask 31744
  %v82 = vsel %vm80, %v59, 0
  %v85 = vsel %vm80, %v60, 0
  %v88 = vsel %vm80, %v61, 0
  %v91 = vsel %vm80, %v62, 0
  %v94 = vsel %vm80, %v63, 0
  %v97 = vsel %vm80, %v64, 0
  %v100 = vsel %vm80, %v65, 0
  %v103 = vsel %vm80, %v66, 0
  %v106 = vsel %vm80, %v67, 0
  %v109 = vsel %vm80, %v68, 0
  %v112 = vsel %vm80, %v69, 0
  %v115 = vsel %vm80, %v70, 0
  %v118 = vsel %vm80, %v71, 0
  %v121 = vsel %vm80, %v72, 0
  %v124 = vsel %vm80, %v73, 0
  %v127 = vsel %vm80, %v74, 0
  %vm129 = vcmask 1041408
  %v131 = vsel %vm129, %v75, 0
  %133 = vmatpush.bf16.msra.mxu0 0
  %134 = vmatpush.bf16.msra.mxu0 0
  %135 = vmatpush.bf16.msra.mxu0 0
  %136 = vmatpush.bf16.msra.mxu0 0
  %137 = vmatpush.bf16.msra.mxu0 0
  %138 = vmatpush.bf16.msra.mxu0 0
  %139 = vmatpush.bf16.msra.mxu0 0
  %140 = vmatpush.bf16.msra.mxu0 %v131
  %141 = vmatmul.bf16.gmra.mxu0 %v82
  %v142 = vpop.f32.mrf.mxu0
  %v143 = vadd.f32 %v78, %v142
  %v144 = vpop.f32.mrf.mxu0
  %v145 = vadd.f32 %v78, %v144
  %146 = vmatmul.bf16.gmra.mxu0 %v85
  %v147 = vpop.f32.mrf.mxu0
  %v148 = vadd.f32 %v78, %v147
  %v149 = vpop.f32.mrf.mxu0
  %v150 = vadd.f32 %v78, %v149
  %151 = vmatmul.bf16.gmra.mxu0 %v88
  %v152 = vpop.f32.mrf.mxu0
  %v153 = vadd.f32 %v78, %v152
  %v154 = vpop.f32.mrf.mxu0
  %v155 = vadd.f32 %v78, %v154
  %156 = vmatmul.bf16.gmra.mxu0 %v91
  %v157 = vpop.f32.mrf.mxu0
  %v158 = vadd.f32 %v78, %v157
  %v159 = vpop.f32.mrf.mxu0
  %v160 = vadd.f32 %v78, %v159
  %161 = vmatmul.bf16.gmra.mxu0 %v94
  %v162 = vpop.f32.mrf.mxu0
  %v163 = vadd.f32 %v78, %v162
  %v164 = vpop.f32.mrf.mxu0
  %v165 = vadd.f32 %v78, %v164
  %166 = vmatmul.bf16.gmra.mxu0 %v97
  %v167 = vpop.f32.mrf.mxu0
  %v168 = vadd.f32 %v78, %v167
  %v169 = vpop.f32.mrf.mxu0
  %v170 = vadd.f32 %v78, %v169
  %171 = vmatmul.bf16.gmra.mxu0 %v100
  %v172 = vpop.f32.mrf.mxu0
  %v173 = vadd.f32 %v78, %v172
  %v174 = vpop.f32.mrf.mxu0
  %v175 = vadd.f32 %v78, %v174
  %176 = vmatmul.bf16.gmra.mxu0 %v103
  %v177 = vpop.f32.mrf.mxu0
  %v178 = vadd.f32 %v78, %v177
  %v179 = vpop.f32.mrf.mxu0
  %v180 = vadd.f32 %v78, %v179
  %181 = vmatmul.bf16.gmra.mxu0 %v106
  %v182 = vpop.f32.mrf.mxu0
  %v183 = vadd.f32 %v78, %v182
  %v184 = vpop.f32.mrf.mxu0
  %v185 = vadd.f32 %v78, %v184
  %186 = vmatmul.bf16.gmra.mxu0 %v109
  %v187 = vpop.f32.mrf.mxu0
  %v188 = vadd.f32 %v78, %v187
  %v189 = vpop.f32.mrf.mxu0
  %v190 = vadd.f32 %v78, %v189
  %191 = vmatmul.bf16.gmra.mxu0 %v112
  %v192 = vpop.f32.mrf.mxu0
  %v193 = vadd.f32 %v78, %v192
  %v194 = vpop.f32.mrf.mxu0
  %v195 = vadd.f32 %v78, %v194
  %196 = vmatmul.bf16.gmra.mxu0 %v115
  %v197 = vpop.f32.mrf.mxu0
  %v198 = vadd.f32 %v78, %v197
  %v199 = vpop.f32.mrf.mxu0
  %v200 = vadd.f32 %v78, %v199
  %201 = vmatmul.bf16.gmra.mxu0 %v118
  %v202 = vpop.f32.mrf.mxu0
  %v203 = vadd.f32 %v78, %v202
  %v204 = vpop.f32.mrf.mxu0
  %v205 = vadd.f32 %v78, %v204
  %206 = vmatmul.bf16.gmra.mxu0 %v121
  %v207 = vpop.f32.mrf.mxu0
  %v208 = vadd.f32 %v78, %v207
  %v209 = vpop.f32.mrf.mxu0
  %v210 = vadd.f32 %v78, %v209
  %211 = vmatmul.bf16.gmra.mxu0 %v124
  %v212 = vpop.f32.mrf.mxu0
  %v213 = vadd.f32 %v78, %v212
  %v214 = vpop.f32.mrf.mxu0
  %v215 = vadd.f32 %v78, %v214
  %216 = vmatmul.bf16.gmra.mxu0 %v127
  %v217 = vpop.f32.mrf.mxu0
  %v218 = vadd.f32 %v78, %v217
  %v219 = vpop.f32.mrf.mxu0
  %v220 = vadd.f32 %v78, %v219
  %221 = vdwg.mxu0
  %v222 = vmax.f32 %v143, 0.0
  %v223 = vmax.f32 %v145, 0.0
  %v224 = vmax.f32 %v148, 0.0
  %v225 = vmax.f32 %v150, 0.0
  %v226 = vmax.f32 %v153, 0.0
  %v227 = vmax.f32 %v155, 0.0
  %v228 = vmax.f32 %v158, 0.0
  %v229 = vmax.f32 %v160, 0.0
  %v230 = vmax.f32 %v163, 0.0
  %v231 = vmax.f32 %v165, 0.0
  %v232 = vmax.f32 %v168, 0.0
  %v233 = vmax.f32 %v170, 0.0
  %v234 = vmax.f32 %v173, 0.0
  %v235 = vmax.f32 %v175, 0.0
  %v236 = vmax.f32 %v178, 0.0
  %v237 = vmax.f32 %v180, 0.0
  %v238 = vmax.f32 %v183, 0.0
  %v239 = vmax.f32 %v185, 0.0
  %v240 = vmax.f32 %v188, 0.0
  %v241 = vmax.f32 %v190, 0.0
  %v242 = vmax.f32 %v193, 0.0
  %v243 = vmax.f32 %v195, 0.0
  %v244 = vmax.f32 %v198, 0.0
  %v245 = vmax.f32 %v200, 0.0
  %v246 = vmax.f32 %v203, 0.0
  %v247 = vmax.f32 %v205, 0.0
  %v248 = vmax.f32 %v208, 0.0
  %v249 = vmax.f32 %v210, 0.0
  %v250 = vmax.f32 %v213, 0.0
  %v251 = vmax.f32 %v215, 0.0
  %v252 = vmax.f32 %v218, 0.0
  %v253 = vmax.f32 %v220, 0.0
  %v254 = vpack.c.bf16 %v223, %v222
  %v255 = vpack.c.bf16 %v225, %v224
  %v256 = vpack.c.bf16 %v227, %v226
  %v257 = vpack.c.bf16 %v229, %v228
  %v258 = vpack.c.bf16 %v231, %v230
  %v259 = vpack.c.bf16 %v233, %v232
  %v260 = vpack.c.bf16 %v235, %v234
  %v261 = vpack.c.bf16 %v237, %v236
  %v262 = vpack.c.bf16 %v239, %v238
  %v263 = vpack.c.bf16 %v241, %v240
  %v264 = vpack.c.bf16 %v243, %v242
  %v265 = vpack.c.bf16 %v245, %v244
  %v266 = vpack.c.bf16 %v247, %v246
  %v267 = vpack.c.bf16 %v249, %v248
  %v268 = vpack.c.bf16 %v251, %v250
  %v269 = vpack.c.bf16 %v253, %v252
  %v270 = vld [vmem:[%s3] sm:$0xf]
  %v271 = vld [vmem:[%s3 + $0x4] sm:$0xf]
  %v272 = vld [vmem:[%s3 + $0x8] sm:$0xf]
  %v273 = vld [vmem:[%s3 + $0xc] sm:$0xf]
  %v274 = vld [vmem:[%s4] sm:$0x1]
  %v276 = vperm.slane %v274, 0
  %v282 = vunpack.c.l.b16 %v270
  %v283 = vunpack.c.l.b16 %v271
  %v284 = vunpack.c.l.b16 %v272
  %v285 = vunpack.c.l.b16 %v273
  %v286 = vpack.c.b16 %v283, %v282
  %v287 = vpack.c.b16 %v285, %v284
  %vm290 = vcmask 261120
  %v292 = vsel %vm290, %v254, 0
  %v295 = vsel %vm290, %v255, 0
  %v298 = vsel %vm290, %v256, 0
  %v301 = vsel %vm290, %v257, 0
  %v304 = vsel %vm290, %v258, 0
  %v307 = vsel %vm290, %v259, 0
  %v310 = vsel %vm290, %v260, 0
  %v313 = vsel %vm290, %v261, 0
  %v316 = vsel %vm290, %v262, 0
  %v319 = vsel %vm290, %v263, 0
  %v322 = vsel %vm290, %v264, 0
  %v325 = vsel %vm290, %v265, 0
  %v328 = vsel %vm290, %v266, 0
  %v331 = vsel %vm290, %v267, 0
  %v334 = vsel %vm290, %v268, 0
  %v337 = vsel %vm290, %v269, 0
  %339 = vmatpush.bf16.msra.mxu0 0
  %340 = vmatpush.bf16.msra.mxu0 0
  %341 = vmatpush.bf16.msra.mxu0 0
  %342 = vmatpush.bf16.msra.mxu0 0
  %343 = vmatpush.bf16.msra.mxu0 0
  %344 = vmatpush.bf16.msra.mxu0 0
  %345 = vmatpush.bf16.msra.mxu0 %v287
  %346 = vmatpush.bf16.msra.mxu0 %v286
  %347 = vmatmul.bf16.gmra.mxu0 %v292
  %v348 = vpop.f32.mrf.mxu0
  %v349 = vadd.f32 %v276, %v348
  %v350 = vpop.f32.mrf.mxu0
  %v351 = vadd.f32 %v276, %v350
  %352 = vmatmul.bf16.gmra.mxu0 %v295
  %v353 = vpop.f32.mrf.mxu0
  %v354 = vadd.f32 %v276, %v353
  %v355 = vpop.f32.mrf.mxu0
  %v356 = vadd.f32 %v276, %v355
  %357 = vmatmul.bf16.gmra.mxu0 %v298
  %v358 = vpop.f32.mrf.mxu0
  %v359 = vadd.f32 %v276, %v358
  %v360 = vpop.f32.mrf.mxu0
  %v361 = vadd.f32 %v276, %v360
  %362 = vmatmul.bf16.gmra.mxu0 %v301
  %v363 = vpop.f32.mrf.mxu0
  %v364 = vadd.f32 %v276, %v363
  %v365 = vpop.f32.mrf.mxu0
  %v366 = vadd.f32 %v276, %v365
  %367 = vmatmul.bf16.gmra.mxu0 %v304
  %v368 = vpop.f32.mrf.mxu0
  %v369 = vadd.f32 %v276, %v368
  %v370 = vpop.f32.mrf.mxu0
  %v371 = vadd.f32 %v276, %v370
  %372 = vmatmul.bf16.gmra.mxu0 %v307
  %v373 = vpop.f32.mrf.mxu0
  %v374 = vadd.f32 %v276, %v373
  %v375 = vpop.f32.mrf.mxu0
  %v376 = vadd.f32 %v276, %v375
  %377 = vmatmul.bf16.gmra.mxu0 %v310
  %v378 = vpop.f32.mrf.mxu0
  %v379 = vadd.f32 %v276, %v378
  %v380 = vpop.f32.mrf.mxu0
  %v381 = vadd.f32 %v276, %v380
  %382 = vmatmul.bf16.gmra.mxu0 %v313
  %v383 = vpop.f32.mrf.mxu0
  %v384 = vadd.f32 %v276, %v383
  %v385 = vpop.f32.mrf.mxu0
  %v386 = vadd.f32 %v276, %v385
  %387 = vmatmul.bf16.gmra.mxu0 %v316
  %v388 = vpop.f32.mrf.mxu0
  %v389 = vadd.f32 %v276, %v388
  %v390 = vpop.f32.mrf.mxu0
  %v391 = vadd.f32 %v276, %v390
  %392 = vmatmul.bf16.gmra.mxu0 %v319
  %v393 = vpop.f32.mrf.mxu0
  %v394 = vadd.f32 %v276, %v393
  %v395 = vpop.f32.mrf.mxu0
  %v396 = vadd.f32 %v276, %v395
  %397 = vmatmul.bf16.gmra.mxu0 %v322
  %v398 = vpop.f32.mrf.mxu0
  %v399 = vadd.f32 %v276, %v398
  %v400 = vpop.f32.mrf.mxu0
  %v401 = vadd.f32 %v276, %v400
  %402 = vmatmul.bf16.gmra.mxu0 %v325
  %v403 = vpop.f32.mrf.mxu0
  %v404 = vadd.f32 %v276, %v403
  %v405 = vpop.f32.mrf.mxu0
  %v406 = vadd.f32 %v276, %v405
  %407 = vmatmul.bf16.gmra.mxu0 %v328
  %v408 = vpop.f32.mrf.mxu0
  %v409 = vadd.f32 %v276, %v408
  %v410 = vpop.f32.mrf.mxu0
  %v411 = vadd.f32 %v276, %v410
  %412 = vmatmul.bf16.gmra.mxu0 %v331
  %v413 = vpop.f32.mrf.mxu0
  %v414 = vadd.f32 %v276, %v413
  %v415 = vpop.f32.mrf.mxu0
  %v416 = vadd.f32 %v276, %v415
  %417 = vmatmul.bf16.gmra.mxu0 %v334
  %v418 = vpop.f32.mrf.mxu0
  %v419 = vadd.f32 %v276, %v418
  %v420 = vpop.f32.mrf.mxu0
  %v421 = vadd.f32 %v276, %v420
  %422 = vmatmul.bf16.gmra.mxu0 %v337
  %v423 = vpop.f32.mrf.mxu0
  %v424 = vadd.f32 %v276, %v423
  %v425 = vpop.f32.mrf.mxu0
  %v426 = vadd.f32 %v276, %v425
  %427 = vdwg.mxu0
  %v428 = vmax.f32 %v349, 0.0
  %v429 = vmax.f32 %v351, 0.0
  %v430 = vmax.f32 %v354, 0.0
  %v431 = vmax.f32 %v356, 0.0
  %v432 = vmax.f32 %v359, 0.0
  %v433 = vmax.f32 %v361, 0.0
  %v434 = vmax.f32 %v364, 0.0
  %v435 = vmax.f32 %v366, 0.0
  %v436 = vmax.f32 %v369, 0.0
  %v437 = vmax.f32 %v371, 0.0
  %v438 = vmax.f32 %v374, 0.0
  %v439 = vmax.f32 %v376, 0.0
  %v440 = vmax.f32 %v379, 0.0
  %v441 = vmax.f32 %v381, 0.0
  %v442 = vmax.f32 %v384, 0.0
  %v443 = vmax.f32 %v386, 0.0
  %v444 = vmax.f32 %v389, 0.0
  %v445 = vmax.f32 %v391, 0.0
  %v446 = vmax.f32 %v394, 0.0
  %v447 = vmax.f32 %v396, 0.0
  %v448 = vmax.f32 %v399, 0.0
  %v449 = vmax.f32 %v401, 0.0
  %v450 = vmax.f32 %v404, 0.0
  %v451 = vmax.f32 %v406, 0.0
  %v452 = vmax.f32 %v409, 0.0
  %v453 = vmax.f32 %v411, 0.0
  %v454 = vmax.f32 %v414, 0.0
  %v455 = vmax.f32 %v416, 0.0
  %v456 = vmax.f32 %v419, 0.0
  %v457 = vmax.f32 %v421, 0.0
  %v458 = vmax.f32 %v424, 0.0
  %v459 = vmax.f32 %v426, 0.0
  %v460 = vpack.c.bf16 %v429, %v428
  %v461 = vpack.c.bf16 %v431, %v430
  %v462 = vpack.c.bf16 %v433, %v432
  %v463 = vpack.c.bf16 %v435, %v434
  %v464 = vpack.c.bf16 %v437, %v436
  %v465 = vpack.c.bf16 %v439, %v438
  %v466 = vpack.c.bf16 %v441, %v440
  %v467 = vpack.c.bf16 %v443, %v442
  %v468 = vpack.c.bf16 %v445, %v444
  %v469 = vpack.c.bf16 %v447, %v446
  %v470 = vpack.c.bf16 %v449, %v448
  %v471 = vpack.c.bf16 %v451, %v450
  %v472 = vpack.c.bf16 %v453, %v452
  %v473 = vpack.c.bf16 %v455, %v454
  %v474 = vpack.c.bf16 %v457, %v456
  %v475 = vpack.c.bf16 %v459, %v458
  %v476 = vld [vmem:[%s5] sm:$0xf]
  %v477 = vld [vmem:[%s5 + $0x4] sm:$0xf]
  %v478 = vld [vmem:[%s5 + $0x8] sm:$0xf]
  %v479 = vld [vmem:[%s5 + $0xc] sm:$0xf]
  %v480 = vld [vmem:[%s6] sm:$0x1]
  %v482 = vperm.slane %v480, 0
  %v488 = vunpack.c.l.b16 %v476
  %v489 = vunpack.c.l.b16 %v477
  %v490 = vunpack.c.l.b16 %v478
  %v491 = vunpack.c.l.b16 %v479
  %v492 = vpack.c.b16 %v489, %v488
  %v493 = vpack.c.b16 %v491, %v490
  %v497 = vsel %vm290, %v460, 0
  %v500 = vsel %vm290, %v461, 0
  %v503 = vsel %vm290, %v462, 0
  %v506 = vsel %vm290, %v463, 0
  %v509 = vsel %vm290, %v464, 0
  %v512 = vsel %vm290, %v465, 0
  %v515 = vsel %vm290, %v466, 0
  %v518 = vsel %vm290, %v467, 0
  %v521 = vsel %vm290, %v468, 0
  %v524 = vsel %vm290, %v469, 0
  %v527 = vsel %vm290, %v470, 0
  %v530 = vsel %vm290, %v471, 0
  %v533 = vsel %vm290, %v472, 0
  %v536 = vsel %vm290, %v473, 0
  %v539 = vsel %vm290, %v474, 0
  %v542 = vsel %vm290, %v475, 0
  %544 = vmatpush.bf16.msra.mxu0 0
  %545 = vmatpush.bf16.msra.mxu0 0
  %546 = vmatpush.bf16.msra.mxu0 0
  %547 = vmatpush.bf16.msra.mxu0 0
  %548 = vmatpush.bf16.msra.mxu0 0
  %549 = vmatpush.bf16.msra.mxu0 0
  %550 = vmatpush.bf16.msra.mxu0 %v493
  %551 = vmatpush.bf16.msra.mxu0 %v492
  %552 = vmatmul.bf16.gmra.mxu0 %v497
  %v553 = vpop.f32.mrf.mxu0
  %v554 = vadd.f32 %v482, %v553
  %v555 = vpop.f32.mrf.mxu0
  %v556 = vadd.f32 %v482, %v555
  %557 = vmatmul.bf16.gmra.mxu0 %v500
  %v558 = vpop.f32.mrf.mxu0
  %v559 = vadd.f32 %v482, %v558
  %v560 = vpop.f32.mrf.mxu0
  %v561 = vadd.f32 %v482, %v560
  %562 = vmatmul.bf16.gmra.mxu0 %v503
  %v563 = vpop.f32.mrf.mxu0
  %v564 = vadd.f32 %v482, %v563
  %v565 = vpop.f32.mrf.mxu0
  %v566 = vadd.f32 %v482, %v565
  %567 = vmatmul.bf16.gmra.mxu0 %v506
  %v568 = vpop.f32.mrf.mxu0
  %v569 = vadd.f32 %v482, %v568
  %v570 = vpop.f32.mrf.mxu0
  %v571 = vadd.f32 %v482, %v570
  %572 = vmatmul.bf16.gmra.mxu0 %v509
  %v573 = vpop.f32.mrf.mxu0
  %v574 = vadd.f32 %v482, %v573
  %v575 = vpop.f32.mrf.mxu0
  %v576 = vadd.f32 %v482, %v575
  %577 = vmatmul.bf16.gmra.mxu0 %v512
  %v578 = vpop.f32.mrf.mxu0
  %v579 = vadd.f32 %v482, %v578
  %v580 = vpop.f32.mrf.mxu0
  %v581 = vadd.f32 %v482, %v580
  %582 = vmatmul.bf16.gmra.mxu0 %v515
  %v583 = vpop.f32.mrf.mxu0
  %v584 = vadd.f32 %v482, %v583
  %v585 = vpop.f32.mrf.mxu0
  %v586 = vadd.f32 %v482, %v585
  %587 = vmatmul.bf16.gmra.mxu0 %v518
  %v588 = vpop.f32.mrf.mxu0
  %v589 = vadd.f32 %v482, %v588
  %v590 = vpop.f32.mrf.mxu0
  %v591 = vadd.f32 %v482, %v590
  %592 = vmatmul.bf16.gmra.mxu0 %v521
  %v593 = vpop.f32.mrf.mxu0
  %v594 = vadd.f32 %v482, %v593
  %v595 = vpop.f32.mrf.mxu0
  %v596 = vadd.f32 %v482, %v595
  %597 = vmatmul.bf16.gmra.mxu0 %v524
  %v598 = vpop.f32.mrf.mxu0
  %v599 = vadd.f32 %v482, %v598
  %v600 = vpop.f32.mrf.mxu0
  %v601 = vadd.f32 %v482, %v600
  %602 = vmatmul.bf16.gmra.mxu0 %v527
  %v603 = vpop.f32.mrf.mxu0
  %v604 = vadd.f32 %v482, %v603
  %v605 = vpop.f32.mrf.mxu0
  %v606 = vadd.f32 %v482, %v605
  %607 = vmatmul.bf16.gmra.mxu0 %v530
  %v608 = vpop.f32.mrf.mxu0
  %v609 = vadd.f32 %v482, %v608
  %v610 = vpop.f32.mrf.mxu0
  %v611 = vadd.f32 %v482, %v610
  %612 = vmatmul.bf16.gmra.mxu0 %v533
  %v613 = vpop.f32.mrf.mxu0
  %v614 = vadd.f32 %v482, %v613
  %v615 = vpop.f32.mrf.mxu0
  %v616 = vadd.f32 %v482, %v615
  %617 = vmatmul.bf16.gmra.mxu0 %v536
  %v618 = vpop.f32.mrf.mxu0
  %v619 = vadd.f32 %v482, %v618
  %v620 = vpop.f32.mrf.mxu0
  %v621 = vadd.f32 %v482, %v620
  %622 = vmatmul.bf16.gmra.mxu0 %v539
  %v623 = vpop.f32.mrf.mxu0
  %v624 = vadd.f32 %v482, %v623
  %v625 = vpop.f32.mrf.mxu0
  %v626 = vadd.f32 %v482, %v625
  %627 = vmatmul.bf16.gmra.mxu0 %v542
  %v628 = vpop.f32.mrf.mxu0
  %v629 = vadd.f32 %v482, %v628
  %v630 = vpop.f32.mrf.mxu0
  %v631 = vadd.f32 %v482, %v630
  %632 = vdwg.mxu0
  %vm633 = vcmask 23552
  %634 = vst.msk [vmem:[%s7] sm:$0xff] %vm633, %v554
  %635 = vst.msk [vmem:[%s7 + $0x8] sm:$0xff] %vm633, %v556
  %636 = vst.msk [vmem:[%s7 + $0x10] sm:$0xff] %vm633, %v559
  %637 = vst.msk [vmem:[%s7 + $0x18] sm:$0xff] %vm633, %v561
  %638 = vst.msk [vmem:[%s7 + $0x20] sm:$0xff] %vm633, %v564
  %639 = vst.msk [vmem:[%s7 + $0x28] sm:$0xff] %vm633, %v566
  %640 = vst.msk [vmem:[%s7 + $0x30] sm:$0xff] %vm633, %v569
  %641 = vst.msk [vmem:[%s7 + $0x38] sm:$0xff] %vm633, %v571
  %642 = vst.msk [vmem:[%s7 + $0x40] sm:$0xff] %vm633, %v574
  %643 = vst.msk [vmem:[%s7 + $0x48] sm:$0xff] %vm633, %v576
  %644 = vst.msk [vmem:[%s7 + $0x50] sm:$0xff] %vm633, %v579
  %645 = vst.msk [vmem:[%s7 + $0x58] sm:$0xff] %vm633, %v581
  %646 = vst.msk [vmem:[%s7 + $0x60] sm:$0xff] %vm633, %v584
  %647 = vst.msk [vmem:[%s7 + $0x68] sm:$0xff] %vm633, %v586
  %648 = vst.msk [vmem:[%s7 + $0x70] sm:$0xff] %vm633, %v589
  %649 = vst.msk [vmem:[%s7 + $0x78] sm:$0xff] %vm633, %v591
  %650 = vst.msk [vmem:[%s7 + $0x80] sm:$0xff] %vm633, %v594
  %651 = vst.msk [vmem:[%s7 + $0x88] sm:$0xff] %vm633, %v596
  %652 = vst.msk [vmem:[%s7 + $0x90] sm:$0xff] %vm633, %v599
  %653 = vst.msk [vmem:[%s7 + $0x98] sm:$0xff] %vm633, %v601
  %654 = vst.msk [vmem:[%s7 + $0xa0] sm:$0xff] %vm633, %v604
  %655 = vst.msk [vmem:[%s7 + $0xa8] sm:$0xff] %vm633, %v606
  %656 = vst.msk [vmem:[%s7 + $0xb0] sm:$0xff] %vm633, %v609
  %657 = vst.msk [vmem:[%s7 + $0xb8] sm:$0xff] %vm633, %v611
  %658 = vst.msk [vmem:[%s7 + $0xc0] sm:$0xff] %vm633, %v614
  %659 = vst.msk [vmem:[%s7 + $0xc8] sm:$0xff] %vm633, %v616
  %660 = vst.msk [vmem:[%s7 + $0xd0] sm:$0xff] %vm633, %v619
  %661 = vst.msk [vmem:[%s7 + $0xd8] sm:$0xff] %vm633, %v621
  %662 = vst.msk [vmem:[%s7 + $0xe0] sm:$0xff] %vm633, %v624
  %663 = vst.msk [vmem:[%s7 + $0xe8] sm:$0xff] %vm633, %v626
  %664 = vst.msk [vmem:[%s7 + $0xf0] sm:$0xff] %vm633, %v629
  %665 = vst.msk [vmem:[%s7 + $0xf8] sm:$0xff] %vm633, %v631
  // Predicated region
  $region30: #{tpu_custom_call.1} parent=0 // pred_check
    _
  $region31: #{tpu_custom_call.1} parent=0 // pred_check_branch
    %667 = sbr.rel (0) target = $region33
  $region32: #{tpu_custom_call.1} parent=0 // pred_region
    _
  $region33: #{tpu_custom_call.1} parent=0 // pred_fallthru
    _
  // Predicated region
  $region34: #{tpu_custom_call.1} parent=0 // pred_check
    _
  $region35: #{tpu_custom_call.1} parent=0 // pred_check_branch
    %669 = sbr.rel (0) target = $region37
  $region36: #{tpu_custom_call.1} parent=0 // pred_region
    _
  $region37: #{tpu_custom_call.1} parent=0 // pred_fallthru
    _

</llo_original>
